<compile_context>
chip_gen: v6e
topology: v6e:2x2x1
jax: 0.10.0
libtpu: 0.0.40
codegen_flags: <defaults>
</compile_context>

<pallas_src>
import jax
import jax.numpy as jnp
from jax.experimental import pallas as pl
from jax.experimental.pallas import tpu as pltpu


def _simam_kernel(x_ref, o_ref, *, inv_hw, inv_n, e_lambda):
    # x_ref / o_ref: (TM, HW) tile in VMEM; one row == one (b, c) channel.
    x = x_ref[...].astype(jnp.float32)

    # Two independent lane-axis reductions (variance identity).
    sum_x = jnp.sum(x, axis=-1, keepdims=True)            # (TM, 1)
    sum_x2 = jnp.sum(x * x, axis=-1, keepdims=True)        # (TM, 1)

    mu = sum_x * inv_hw                                     # per-channel mean
    s = sum_x2 - sum_x * mu                                 # sum((x - mu)^2)

    d2 = (x - mu) * (x - mu)                                # elementwise numerator

    denom = 4.0 * (s * inv_n + e_lambda)                    # (TM, 1)
    inv_d = pl.reciprocal(denom, approx=True)               # EUP slot
    inv_d = inv_d * (2.0 - denom * inv_d)                   # one Newton step (per-row, cheap)

    y = d2 * inv_d + 0.5
    attn = jax.nn.sigmoid(y)
    o_ref[...] = (x * attn).astype(o_ref.dtype)


def simam(x, e_lambda=1e-4, *, target_block_bytes=2 * 1024 * 1024):
    """SimAM forward. x: (B, C, H, W)."""
    b, c, h, w = x.shape
    hw = h * w
    n = float(hw - 1)
    rows = b * c
    dtype_bytes = jnp.dtype(x.dtype).itemsize

    x2d = x.reshape(rows, hw)                               # free for NCHW-contiguous

    # ---- Row tile selection -------------------------------------------------
    rows8 = ((rows + 7) // 8) * 8
    bytes_per_row = max(1, hw * dtype_bytes)
    tm = max(8, (target_block_bytes // bytes_per_row) // 8 * 8)

    # Keep >= ~8 grid steps when there is enough work (pipelining + megacore).
    min_steps = 8
    if rows8 >= 8 * min_steps and rows8 // tm < min_steps:
        tm = max(8, (rows8 // min_steps) // 8 * 8)

    tm = min(tm, rows8, 2048)
    if tm >= rows:
        tm = rows                                           # full-extent block (always legal)

    grid = (pl.cdiv(rows, tm),)                             # partial last block is masked

    kernel = lambda x_ref, o_ref: _simam_kernel(
        x_ref, o_ref, inv_hw=1.0 / hw, inv_n=1.0 / n, e_lambda=float(e_lambda)
    )

    cost = pl.CostEstimate(
        flops=10 * rows * hw,
        transcendentals=rows * hw,                          # sigmoid exp
        bytes_accessed=2 * rows * hw * dtype_bytes,
    )

    out2d = pl.pallas_call(
        kernel,
        out_shape=jax.ShapeDtypeStruct((rows, hw), x.dtype),
        grid_spec=pltpu.PrefetchScalarGridSpec(
            num_scalar_prefetch=0,
            grid=grid,
            in_specs=[pl.BlockSpec((tm, hw), lambda i: (i, 0))],
            out_specs=pl.BlockSpec((tm, hw), lambda i: (i, 0)),
        ),
        compiler_params=pltpu.CompilerParams(
            dimension_semantics=("parallel",),
        ),
        cost_estimate=cost,
    )(x2d)

    return out2d.reshape(b, c, h, w)


def simam_ref(x, e_lambda=1e-4):
    # Pure-JAX reference mirroring the PyTorch forward.
    b, c, h, w = x.shape
    n = w * h - 1
    mu = jnp.mean(x, axis=(2, 3), keepdims=True)
    d2 = (x - mu) ** 2
    y = d2 / (4.0 * (jnp.sum(d2, axis=(2, 3), keepdims=True) / n + e_lambda)) + 0.5
    return x * jax.nn.sigmoid(y)


if __name__ == "__main__":
    key = jax.random.PRNGKey(0)
    x = jax.random.normal(key, (2, 4, 16, 16), dtype=jnp.float32)

    out = jax.block_until_ready(simam(x))
    ref = simam_ref(x)

    assert out.shape == x.shape
    max_err = float(jnp.max(jnp.abs(out - ref)))
    assert jnp.allclose(out, ref, atol=1e-3, rtol=1e-3), max_err
    print("KERNEL_OK")
</pallas_src>

<mosaic_0001>
module attributes {stable_mosaic.version = 11 : i64} {
  func.func @_lambda_(%arg0: i32, %arg1: memref<8x256xf32, #tpu.memory_space<vmem>>, %arg2: memref<8x256xf32, #tpu.memory_space<vmem>>) attributes {dimension_semantics = [#tpu.dimension_semantics<parallel>], iteration_bounds = array<i64: 1>, scalar_prefetch = 0 : i64, scratch_operands = 0 : i64, tpu.core_type = #tpu.core_type<tc>, window_params = [{transform_indices = @transform_0, window_bounds = array<i64: 8, 256>}, {transform_indices = @transform_1, window_bounds = array<i64: 8, 256>}]} {
    %c0 = arith.constant 0 : index
    %c0_0 = arith.constant 0 : index
    %0 = vector.load %arg1[%c0, %c0_0] : memref<8x256xf32, #tpu.memory_space<vmem>>, vector<8x256xf32>
    %cst = arith.constant dense<0.000000e+00> : vector<8xf32>
    %1 = vector.multi_reduction <add>, %0, %cst [1] : vector<8x256xf32> to vector<8xf32>
    %2 = vector.shape_cast %1 : vector<8xf32> to vector<8x1xf32>
    %3 = arith.mulf %0, %0 : vector<8x256xf32>
    %cst_1 = arith.constant dense<0.000000e+00> : vector<8xf32>
    %4 = vector.multi_reduction <add>, %3, %cst_1 [1] : vector<8x256xf32> to vector<8xf32>
    %5 = vector.shape_cast %4 : vector<8xf32> to vector<8x1xf32>
    %cst_2 = arith.constant 3.906250e-03 : f32
    %6 = vector.broadcast %cst_2 : f32 to vector<8x1xf32>
    %7 = arith.mulf %2, %6 : vector<8x1xf32>
    %8 = arith.mulf %2, %7 : vector<8x1xf32>
    %9 = arith.subf %5, %8 : vector<8x1xf32>
    %10 = vector.broadcast %7 : vector<8x1xf32> to vector<8x256xf32>
    %11 = arith.subf %0, %10 : vector<8x256xf32>
    %12 = vector.broadcast %7 : vector<8x1xf32> to vector<8x256xf32>
    %13 = arith.subf %0, %12 : vector<8x256xf32>
    %14 = arith.mulf %11, %13 : vector<8x256xf32>
    %cst_3 = arith.constant 0.00392156886 : f32
    %15 = vector.broadcast %cst_3 : f32 to vector<8x1xf32>
    %16 = arith.mulf %9, %15 : vector<8x1xf32>
    %cst_4 = arith.constant 9.99999974E-5 : f32
    %17 = vector.broadcast %cst_4 : f32 to vector<8x1xf32>
    %18 = arith.addf %16, %17 : vector<8x1xf32>
    %cst_5 = arith.constant 4.000000e+00 : f32
    %19 = vector.broadcast %cst_5 : f32 to vector<8x1xf32>
    %20 = arith.mulf %19, %18 : vector<8x1xf32>
    %21 = tpu.reciprocal %20 {approx = true} : vector<8x1xf32> -> vector<8x1xf32>
    %22 = arith.mulf %20, %21 : vector<8x1xf32>
    %cst_6 = arith.constant 2.000000e+00 : f32
    %23 = vector.broadcast %cst_6 : f32 to vector<8x1xf32>
    %24 = arith.subf %23, %22 : vector<8x1xf32>
    %25 = arith.mulf %21, %24 : vector<8x1xf32>
    %26 = vector.broadcast %25 : vector<8x1xf32> to vector<8x256xf32>
    %27 = arith.mulf %14, %26 : vector<8x256xf32>
    %cst_7 = arith.constant 5.000000e-01 : f32
    %28 = vector.broadcast %cst_7 : f32 to vector<8x256xf32>
    %29 = arith.addf %27, %28 : vector<8x256xf32>
    %30 = arith.negf %29 : vector<8x256xf32>
    %31 = math.exp %30 : vector<8x256xf32>
    %cst_8 = arith.constant 1.000000e+00 : f32
    %32 = vector.broadcast %cst_8 : f32 to vector<8x256xf32>
    %33 = arith.addf %32, %31 : vector<8x256xf32>
    %34 = arith.divf %32, %33 : vector<8x256xf32>
    %35 = arith.mulf %0, %34 : vector<8x256xf32>
    %c0_9 = arith.constant 0 : index
    %c0_10 = arith.constant 0 : index
    %36 = vector.load %arg2[%c0_9, %c0_10] : memref<8x256xf32, #tpu.memory_space<vmem>>, vector<8x256xf32>
    tpu.vector_store %arg2[%c0_9, %c0_10], %35 {strides = array<i32>} : memref<8x256xf32, #tpu.memory_space<vmem>>, vector<8x256xf32>,
    return
  }
  func.func @transform_0(%arg0: i32) -> (i32, i32) {
    %c0_i32 = arith.constant 0 : i32
    %c0_i32_0 = arith.constant 0 : i32
    return %arg0, %c0_i32 : i32, i32
  }
  func.func @transform_1(%arg0: i32) -> (i32, i32) {
    %c0_i32 = arith.constant 0 : i32
    %c0_i32_0 = arith.constant 0 : i32
    return %arg0, %c0_i32 : i32, i32
  }
}

</mosaic_0001>

<llo_original>
// kernel: tpu_custom_call.1
$region0: #{tpu_custom_call.1}
  #allocation0 [shape = 'u32[]', space=smem, size = 0x4, offset = 0x4, fixed_abs, tag = 'smem constant byte address 0x4 - core index']
  #allocation1 [shape = 'u32[144,128]{1,0:T(1,128)}', space=vmem, size = 0x12000, scoped, tag = 'internal scratch']
  %s0 = inlined_call_operand.hbm [shape: f32[8,256], index: 0, kind: input, shape index: {}]
  %s1 = inlined_call_operand.hbm [shape: f32[8,256], index: 1, kind: output, shape index: {}]
  %s2 = sld [smem:[#allocation0]]
  $region18: #{tpu_custom_call.1} parent=0
    _
  %s4 = ssub.s32 1, %s2
  %s5 = scalar_select 0, %s4, %s2
  $region1: #{tpu_custom_call.1} parent=0
    #allocation2 [shape = 'u8[8192]{0}', space=vmem, size = 0x2000, scoped, tag = 'input window, operand 0, single buffered']
    #allocation3 [shape = 's32[1]{0}', space=sflag, size = 0x4, scoped, tag = 'scoped memory for tpu_custom_call.1']
    #allocation4 [shape = 's32[1]{0}', space=sflag, size = 0x4, scoped, tag = 'scoped memory for tpu_custom_call.1']
    #allocation5 [shape = 'u8[8192]{0}', space=vmem, size = 0x2000, scoped, tag = 'output window, operand 0, single buffered']
    %6 = vsyncpa [#allocation3], 0
    %7 = vsyncpa [#allocation4], 0
    // Predicated region
    $region2: #{tpu_custom_call.1} parent=1 // pred_check
      _
    $region3: #{tpu_custom_call.1} parent=1 // pred_check_branch
      %9 = sbr.rel (0) target = $region5
    $region4: #{tpu_custom_call.1} parent=1 // pred_region
      %s11 = ssub.s32 256, 256
      %12 = vsyncadd [#allocation3], %s11
      %s14 = sshll.u32 [#allocation2], 4
      %s15 = int_to_ptr.vmem [resolvable:$true] %s14
      %17 = dma.hbm_to_vmem [thread:$0]  %s0, 256, %s15, [#allocation3]
    $region5: #{tpu_custom_call.1} parent=1 // pred_fallthru
      _
    // Predicated region
    $region6: #{tpu_custom_call.1} parent=1 // pred_check
      _
    $region7: #{tpu_custom_call.1} parent=1 // pred_check_branch
      %19 = sbr.rel (0) target = $region9
    $region8: #{tpu_custom_call.1} parent=1 // pred_region
      %20 = dma.done [#allocation3], 256
    $region9: #{tpu_custom_call.1} parent=1 // pred_fallthru
      _
    %v21 = vld [vmem:[#allocation2] sm:$0xff]
    %v22 = vld [vmem:[#allocation2 + $0x8] sm:$0xff]
    %v23 = vadd.f32 %v21, %v22
    %24 = vadd.xlane.f32.xlu0 %v23
    %v25 = vpop.xlane.xlu0 %24
    %v26 = vmul.f32 %v21, %v21
    %v27 = vmul.f32 %v22, %v22
    %v28 = vadd.f32 %v26, %v27
    %29 = vadd.xlane.f32.xlu0 %v28
    %v30 = vpop.xlane.xlu0 %29
    %v31 = vmul.f32 %v25, 0.00390625
    %v32 = vmul.f32 %v25, %v31
    %v33 = vsub.f32 %v30, %v32
    %v34 = vsub.f32 %v21, %v31
    %v35 = vsub.f32 %v22, %v31
    %v36 = vmul.f32 %v34, %v34
    %v37 = vmul.f32 %v35, %v35
    %v38 = vmul.f32 %v33, 0.003921569
    %v39 = vadd.f32 %v38, 0.0001
    %v40 = vmul.f32 %v39, 4.0
    %v41 = vrcp.pop %v40
    %v42 = vmul.f32 %v40, %v41
    %v43 = vsub.f32 2.0, %v42
    %v44 = vmul.f32 %v41, %v43
    %v45 = vmul.f32 %v36, %v44
    %v46 = vmul.f32 %v37, %v44
    %v47 = vadd.f32 %v45, 0.5
    %v48 = vadd.f32 %v46, 0.5
    %v49 = vxor.u32 %v47, 2147483648
    %v50 = vxor.u32 %v48, 2147483648
    %v51 = vmul.f32 %v49, 1.442695
    %v52 = vpow.pop %v51
    %v53 = vmul.f32 %v50, 1.442695
    %v54 = vpow.pop %v53
    %v55 = vadd.f32 %v52, 1.0
    %v56 = vadd.f32 %v54, 1.0
    %v57 = vrcp.pop %v55
    %v58 = vmul.f32 1.0, %v57
    %v59 = vrcp.pop %v56
    %v60 = vmul.f32 1.0, %v59
    %v61 = vmul.f32 %v21, %v58
    %v62 = vmul.f32 %v22, %v60
    %63 = vst [vmem:[#allocation5] sm:$0xff] %v61
    %64 = vst [vmem:[#allocation5 + $0x8] sm:$0xff] %v62
    // Predicated region
    $region10: #{tpu_custom_call.1} parent=1 // pred_check
      _
    $region11: #{tpu_custom_call.1} parent=1 // pred_check_branch
      %66 = sbr.rel (0) target = $region13
    $region12: #{tpu_custom_call.1} parent=1 // pred_region
      %s68 = ssub.s32 256, 256
      %69 = vsyncadd [#allocation4], %s68
      %s71 = sshll.u32 [#allocation5], 4
      %s72 = int_to_ptr.vmem [resolvable:$true] %s71
      %74 = dma.vmem_to_hbm [thread:$0]  %s72, 256, %s1, [#allocation4]
    $region13: #{tpu_custom_call.1} parent=1 // pred_fallthru
      _
    // Predicated region
    $region14: #{tpu_custom_call.1} parent=1 // pred_check
      _
    $region15: #{tpu_custom_call.1} parent=1 // pred_check_branch
      %76 = sbr.rel (0) target = $region17
    $region16: #{tpu_custom_call.1} parent=1 // pred_region
      %77 = dma.done [#allocation4], 256
    $region17: #{tpu_custom_call.1} parent=1 // pred_fallthru
      _
    %78 = vsyncpa [#allocation3], 1
    %79 = vsyncpa [#allocation4], 1

</llo_original>
